<compile_context>
chip_gen: v7x
topology: tpu7x:2x2x1
jax: 0.10.0
libtpu: 0.0.40
codegen_flags: <defaults>
</compile_context>

<pallas_src>
import math
import functools

import jax
import jax.numpy as jnp
from jax import lax
from jax.experimental import pallas as pl
from jax.experimental.pallas import tpu as pltpu


def _fusion_kernel(point_ref, img_ref,          # activations, channels-first (C, N)
                   w2_ref, b2_ref,              # fc2:  (PC, IC) bf16, (PC, 1) f32
                   wc1_ref, wc2_ref, bc_ref,    # conv (BN folded): (OUT, PC) bf16 x2, (OUT, 1) f32
                   out_ref,
                   *, pc):
    P = point_ref[0]                                        # (PC, N) f32  == rp^T
    I = img_ref[0]                                          # (IC, N) f32
    P_bf = P.astype(jnp.bfloat16)

    # fc2 (channels-first): RI = W2 @ I + b2  -> (PC, N) f32, == ri^T
    RI = lax.dot_general(w2_ref[...], I.astype(jnp.bfloat16),
                         (((1,), (0,)), ((), ())),
                         preferred_element_type=jnp.float32) + b2_ref[...]
    RI_bf = RI.astype(jnp.bfloat16)

    scale = 1.0 / math.sqrt(pc)
    # s1[m, n] = rp_m . ri_n / sqrt(d).  The reference's second score matrix is
    # exactly s1^T, so a single score matmul suffices.
    s1 = lax.dot_general(P_bf, RI_bf, (((0,), (0,)), ((), ())),
                         preferred_element_type=jnp.float32) * scale        # (N, N)

    # A1 = softmax over dim=1 of the (B,N,N) scores == axis 0 of this block.
    e1 = jnp.exp(s1 - jnp.max(s1, axis=0, keepdims=True))
    a1 = e1 * pl.reciprocal(jnp.sum(e1, axis=0, keepdims=True), approx=True)
    # A2 = softmax_dim1(s1^T) == (softmax of s1 over axis 1)^T; keep it
    # untransposed and contract its first axis below instead.
    e2 = jnp.exp(s1 - jnp.max(s1, axis=1, keepdims=True))
    p2 = e2 * jnp.broadcast_to(
        pl.reciprocal(jnp.sum(e2, axis=1, keepdims=True), approx=True), e2.shape)

    # O1[p, m] = sum_n P[p, n] * a1[m, n]      == (A1 @ rp)^T   (channels-first)
    O1 = lax.dot_general(P_bf, a1.astype(jnp.bfloat16), (((1,), (1,)), ((), ())),
                         preferred_element_type=jnp.float32)                # (PC, N)
    # O2[p, i] = sum_m RI[p, m] * p2[m, i]     == (A2 @ ri)^T   (no NxN transpose)
    O2 = lax.dot_general(RI_bf, p2.astype(jnp.bfloat16), (((1,), (0,)), ((), ())),
                         preferred_element_type=jnp.float32)                # (PC, N)

    # 1x1 conv with BN folded in; weight pre-split so no channel concat needed.
    y = (lax.dot_general(wc1_ref[...], O1.astype(jnp.bfloat16),
                         (((1,), (0,)), ((), ())), preferred_element_type=jnp.float32)
         + lax.dot_general(wc2_ref[...], O2.astype(jnp.bfloat16),
                           (((1,), (0,)), ((), ())), preferred_element_type=jnp.float32)
         + bc_ref[...])                                                      # (OUT, N)
    out_ref[0] = jnp.maximum(y, 0.0).astype(out_ref.dtype)


def atten_fusion_conv3(point_features, img_features, params, *, eps=1e-5):
    """point_features: (B, PC, N), img_features: (B, IC, N)  ->  (B, OUT, N)."""
    B, PC, N = point_features.shape
    IC = img_features.shape[1]
    OUT = params["conv_w"].shape[0]

    # --- host-side parameter prep -------------------------------------------
    # Fold BatchNorm (eval) into the 1x1 conv:  w' = w * s,  b' = (b - mean)*s + beta
    bn_scale = params["bn_gamma"] * lax.rsqrt(params["bn_var"] + eps)        # (OUT,)
    wc = params["conv_w"] * bn_scale[:, None]                                # (OUT, 2*PC)
    bc = ((params["conv_b"] - params["bn_mean"]) * bn_scale + params["bn_beta"])
    wc1 = wc[:, :PC].astype(jnp.bfloat16)                                    # acts on O1
    wc2 = wc[:, PC:].astype(jnp.bfloat16)                                    # acts on O2
    bc = bc.reshape(OUT, 1).astype(jnp.float32)

    w2 = params["fc2_w"].astype(jnp.bfloat16)                                # (PC, IC)
    b2 = params["fc2_b"].reshape(PC, 1).astype(jnp.float32)

    kernel = functools.partial(_fusion_kernel, pc=PC)
    const = lambda r, c: pl.BlockSpec((r, c), lambda b: (0, 0))

    out = pl.pallas_call(
        kernel,
        out_shape=jax.ShapeDtypeStruct((B, OUT, N), jnp.float32),
        grid_spec=pltpu.PrefetchScalarGridSpec(
            num_scalar_prefetch=0,
            grid=(B,),
            in_specs=[
                pl.BlockSpec((1, PC, N), lambda b: (b, 0, 0)),   # point (channels-first)
                pl.BlockSpec((1, IC, N), lambda b: (b, 0, 0)),   # img   (channels-first)
                const(PC, IC),                                   # fc2 weight (bf16)
                const(PC, 1),                                    # fc2 bias
                const(OUT, PC),                                  # conv weight half for O1 (bf16)
                const(OUT, PC),                                  # conv weight half for O2 (bf16)
                const(OUT, 1),                                   # conv bias (BN folded)
            ],
            out_specs=pl.BlockSpec((1, OUT, N), lambda b: (b, 0, 0)),
        ),
        compiler_params=pltpu.CompilerParams(
            dimension_semantics=("parallel",)),                  # B independent -> dual TC on v7x
    )(point_features, img_features, w2, b2, wc1, wc2, bc)
    return out                                                    # already (B, OUT, N)


def _reference(point_features, img_features, params, eps=1e-5):
    """Pure-JAX f32 reference mirroring the PyTorch forward (eval mode)."""
    B, PC, N = point_features.shape
    rp = jnp.transpose(point_features, (0, 2, 1)).astype(jnp.float32)        # (B, N, PC)
    im = jnp.transpose(img_features, (0, 2, 1)).astype(jnp.float32)          # (B, N, IC)
    ri = jnp.einsum("bni,pi->bnp", im, params["fc2_w"]) + params["fc2_b"]    # Linear
    scale = 1.0 / math.sqrt(PC)
    s1 = jnp.einsum("bnp,bmp->bnm", rp, ri) * scale
    a1 = jax.nn.softmax(s1, axis=1)
    s2 = jnp.einsum("bnp,bmp->bnm", ri, rp) * scale
    a2 = jax.nn.softmax(s2, axis=1)
    o1 = jnp.einsum("bnm,bmp->bnp", a1, rp)
    o2 = jnp.einsum("bnm,bmp->bnp", a2, ri)
    fused = jnp.concatenate([o1, o2], axis=-1)                               # (B, N, 2*PC)
    y = jnp.einsum("bnc,oc->bno", fused, params["conv_w"]) + params["conv_b"]
    bn_scale = params["bn_gamma"] * lax.rsqrt(params["bn_var"] + eps)
    y = (y - params["bn_mean"]) * bn_scale + params["bn_beta"]
    y = jnp.maximum(y, 0.0)
    return jnp.transpose(y, (0, 2, 1))                                       # (B, OUT, N)


if __name__ == "__main__":
    # Small deterministic shapes: batch=2, IC=16, PC=8, N=128 points, OUT=32.
    B, IC, PC, N, OUT = 2, 16, 8, 128, 32

    key = jax.random.PRNGKey(0)
    ks = jax.random.split(key, 10)

    # PyTorch-native parameter layouts (Linear: (out,in); Conv1d 1x1: (out,in)).
    params = {
        "fc2_w":    0.1 * jax.random.normal(ks[0], (PC, IC), jnp.float32),
        "fc2_b":    0.1 * jax.random.normal(ks[1], (PC,), jnp.float32),
        "conv_w":   0.1 * jax.random.normal(ks[2], (OUT, 2 * PC), jnp.float32),
        "conv_b":   0.1 * jax.random.normal(ks[3], (OUT,), jnp.float32),
        "bn_gamma": 1.0 + 0.1 * jax.random.normal(ks[4], (OUT,), jnp.float32),
        "bn_beta":  0.1 * jax.random.normal(ks[5], (OUT,), jnp.float32),
        "bn_mean":  0.1 * jax.random.normal(ks[6], (OUT,), jnp.float32),
        "bn_var":   jnp.abs(1.0 + 0.1 * jax.random.normal(ks[7], (OUT,), jnp.float32)),
    }

    point_features = jax.random.normal(ks[8], (B, PC, N), jnp.float32)   # (B, inplanes_P, N)
    img_features = jax.random.normal(ks[9], (B, IC, N), jnp.float32)     # (B, inplanes_I, N)

    out = atten_fusion_conv3(point_features, img_features, params)
    out = jax.block_until_ready(out)

    ref = _reference(point_features, img_features, params)
    assert out.shape == (B, OUT, N)
    # bf16 MXU inputs + approx reciprocal -> compare with a relaxed tolerance.
    assert jnp.allclose(out, ref, atol=2e-2, rtol=2e-2), "mismatch vs JAX reference"

    print("KERNEL_OK")
</pallas_src>

<mosaic_0001>
module attributes {stable_mosaic.version = 11 : i64} {
  func.func @_fusion_kernel(%arg0: i32, %arg1: memref<1x8x128xf32, #tpu.memory_space<vmem>>, %arg2: memref<1x16x128xf32, #tpu.memory_space<vmem>>, %arg3: memref<8x16xbf16, #tpu.memory_space<vmem>>, %arg4: memref<8x1xf32, #tpu.memory_space<vmem>>, %arg5: memref<32x8xbf16, #tpu.memory_space<vmem>>, %arg6: memref<32x8xbf16, #tpu.memory_space<vmem>>, %arg7: memref<32x1xf32, #tpu.memory_space<vmem>>, %arg8: memref<1x32x128xf32, #tpu.memory_space<vmem>>) attributes {dimension_semantics = [#tpu.dimension_semantics<parallel>], iteration_bounds = array<i64: 2>, scalar_prefetch = 0 : i64, scratch_operands = 0 : i64, tpu.core_type = #tpu.core_type<tc>, window_params = [{transform_indices = @transform_0, window_bounds = array<i64: 1, 8, 128>}, {transform_indices = @transform_1, window_bounds = array<i64: 1, 16, 128>}, {pipeline_mode = #tpu.pipeline_mode<synchronous>, transform_indices = @transform_2, window_bounds = array<i64: 8, 16>}, {pipeline_mode = #tpu.pipeline_mode<synchronous>, transform_indices = @transform_3, window_bounds = array<i64: 8, 1>}, {pipeline_mode = #tpu.pipeline_mode<synchronous>, transform_indices = @transform_4, window_bounds = array<i64: 32, 8>}, {pipeline_mode = #tpu.pipeline_mode<synchronous>, transform_indices = @transform_5, window_bounds = array<i64: 32, 8>}, {pipeline_mode = #tpu.pipeline_mode<synchronous>, transform_indices = @transform_6, window_bounds = array<i64: 32, 1>}, {transform_indices = @transform_7, window_bounds = array<i64: 1, 32, 128>}]} {
    %c0 = arith.constant 0 : index
    %c0_0 = arith.constant 0 : index
    %c0_1 = arith.constant 0 : index
    %0 = vector.load %arg1[%c0, %c0_0, %c0_1] : memref<1x8x128xf32, #tpu.memory_space<vmem>>, vector<1x8x128xf32>
    %1 = vector.shape_cast %0 : vector<1x8x128xf32> to vector<8x128xf32>
    %c0_2 = arith.constant 0 : index
    %c0_3 = arith.constant 0 : index
    %c0_4 = arith.constant 0 : index
    %2 = vector.load %arg2[%c0_2, %c0_3, %c0_4] : memref<1x16x128xf32, #tpu.memory_space<vmem>>, vector<1x16x128xf32>
    %3 = vector.shape_cast %2 : vector<1x16x128xf32> to vector<16x128xf32>
    %4 = arith.truncf %1 : vector<8x128xf32> to vector<8x128xbf16>
    %c0_5 = arith.constant 0 : index
    %c0_6 = arith.constant 0 : index
    %5 = vector.load %arg3[%c0_5, %c0_6] : memref<8x16xbf16, #tpu.memory_space<vmem>>, vector<8x16xbf16>
    %6 = arith.truncf %3 : vector<16x128xf32> to vector<16x128xbf16>
    %cst = arith.constant dense<0.000000e+00> : vector<8x128xf32>
    %7 = tpu.matmul %5, %6, %cst {dimension_numbers = #tpu.dot_dimension_numbers<[1], [0], [0], [1], [0, 0, 1, 1], [], []>} : vector<8x16xbf16>, vector<16x128xbf16>, vector<8x128xf32> -> vector<8x128xf32>
    %c0_7 = arith.constant 0 : index
    %c0_8 = arith.constant 0 : index
    %8 = vector.load %arg4[%c0_7, %c0_8] : memref<8x1xf32, #tpu.memory_space<vmem>>, vector<8x1xf32>
    %9 = vector.broadcast %8 : vector<8x1xf32> to vector<8x128xf32>
    %10 = arith.addf %7, %9 : vector<8x128xf32>
    %11 = arith.truncf %10 : vector<8x128xf32> to vector<8x128xbf16>
    %cst_9 = arith.constant dense<0.000000e+00> : vector<128x128xf32>
    %12 = tpu.matmul %4, %11, %cst_9 {dimension_numbers = #tpu.dot_dimension_numbers<[0], [0], [1], [1], [0, 1, 1, 1], [], []>} : vector<8x128xbf16>, vector<8x128xbf16>, vector<128x128xf32> -> vector<128x128xf32>
    %cst_10 = arith.constant 0.353553385 : f32
    %13 = vector.broadcast %cst_10 : f32 to vector<128x128xf32>
    %14 = arith.mulf %12, %13 : vector<128x128xf32>
    %cst_11 = arith.constant dense<0xFF800000> : vector<128xf32>
    %15 = vector.multi_reduction <maximumf>, %14, %cst_11 [0] : vector<128x128xf32> to vector<128xf32>
    %16 = vector.shape_cast %15 : vector<128xf32> to vector<1x128xf32>
    %17 = vector.broadcast %16 : vector<1x128xf32> to vector<128x128xf32>
    %18 = arith.subf %14, %17 : vector<128x128xf32>
    %19 = math.exp %18 : vector<128x128xf32>
    %cst_12 = arith.constant dense<0.000000e+00> : vector<128xf32>
    %20 = vector.multi_reduction <add>, %19, %cst_12 [0] : vector<128x128xf32> to vector<128xf32>
    %21 = vector.shape_cast %20 : vector<128xf32> to vector<1x128xf32>
    %22 = tpu.reciprocal %21 {approx = true} : vector<1x128xf32> -> vector<1x128xf32>
    %23 = vector.broadcast %22 : vector<1x128xf32> to vector<128x128xf32>
    %24 = arith.mulf %19, %23 : vector<128x128xf32>
    %cst_13 = arith.constant dense<0xFF800000> : vector<128xf32>
    %25 = vector.multi_reduction <maximumf>, %14, %cst_13 [1] : vector<128x128xf32> to vector<128xf32>
    %26 = vector.shape_cast %25 : vector<128xf32> to vector<128x1xf32>
    %27 = vector.broadcast %26 : vector<128x1xf32> to vector<128x128xf32>
    %28 = arith.subf %14, %27 : vector<128x128xf32>
    %29 = math.exp %28 : vector<128x128xf32>
    %cst_14 = arith.constant dense<0.000000e+00> : vector<128xf32>
    %30 = vector.multi_reduction <add>, %29, %cst_14 [1] : vector<128x128xf32> to vector<128xf32>
    %31 = vector.shape_cast %30 : vector<128xf32> to vector<128x1xf32>
    %32 = tpu.reciprocal %31 {approx = true} : vector<128x1xf32> -> vector<128x1xf32>
    %33 = vector.shape_cast %32 : vector<128x1xf32> to vector<128x1xf32>
    %34 = vector.broadcast %33 : vector<128x1xf32> to vector<128x128xf32>
    %35 = arith.mulf %29, %34 : vector<128x128xf32>
    %36 = arith.truncf %24 : vector<128x128xf32> to vector<128x128xbf16>
    %cst_15 = arith.constant dense<0.000000e+00> : vector<8x128xf32>
    %37 = tpu.matmul %4, %36, %cst_15 {dimension_numbers = #tpu.dot_dimension_numbers<[1], [1], [0], [0], [0, 0, 1, 0], [], []>} : vector<8x128xbf16>, vector<128x128xbf16>, vector<8x128xf32> -> vector<8x128xf32>
    %38 = arith.truncf %35 : vector<128x128xf32> to vector<128x128xbf16>
    %cst_16 = arith.constant dense<0.000000e+00> : vector<8x128xf32>
    %39 = tpu.matmul %11, %38, %cst_16 {dimension_numbers = #tpu.dot_dimension_numbers<[1], [0], [0], [1], [0, 0, 1, 1], [], []>} : vector<8x128xbf16>, vector<128x128xbf16>, vector<8x128xf32> -> vector<8x128xf32>
    %c0_17 = arith.constant 0 : index
    %c0_18 = arith.constant 0 : index
    %40 = vector.load %arg5[%c0_17, %c0_18] : memref<32x8xbf16, #tpu.memory_space<vmem>>, vector<32x8xbf16>
    %41 = arith.truncf %37 : vector<8x128xf32> to vector<8x128xbf16>
    %cst_19 = arith.constant dense<0.000000e+00> : vector<32x128xf32>
    %42 = tpu.matmul %40, %41, %cst_19 {dimension_numbers = #tpu.dot_dimension_numbers<[1], [0], [0], [1], [0, 0, 1, 1], [], []>} : vector<32x8xbf16>, vector<8x128xbf16>, vector<32x128xf32> -> vector<32x128xf32>
    %c0_20 = arith.constant 0 : index
    %c0_21 = arith.constant 0 : index
    %43 = vector.load %arg6[%c0_20, %c0_21] : memref<32x8xbf16, #tpu.memory_space<vmem>>, vector<32x8xbf16>
    %44 = arith.truncf %39 : vector<8x128xf32> to vector<8x128xbf16>
    %cst_22 = arith.constant dense<0.000000e+00> : vector<32x128xf32>
    %45 = tpu.matmul %43, %44, %cst_22 {dimension_numbers = #tpu.dot_dimension_numbers<[1], [0], [0], [1], [0, 0, 1, 1], [], []>} : vector<32x8xbf16>, vector<8x128xbf16>, vector<32x128xf32> -> vector<32x128xf32>
    %46 = arith.addf %42, %45 : vector<32x128xf32>
    %c0_23 = arith.constant 0 : index
    %c0_24 = arith.constant 0 : index
    %47 = vector.load %arg7[%c0_23, %c0_24] : memref<32x1xf32, #tpu.memory_space<vmem>>, vector<32x1xf32>
    %48 = vector.broadcast %47 : vector<32x1xf32> to vector<32x128xf32>
    %49 = arith.addf %46, %48 : vector<32x128xf32>
    %cst_25 = arith.constant 0.000000e+00 : f32
    %50 = vector.broadcast %cst_25 : f32 to vector<32x128xf32>
    %51 = arith.maximumf %49, %50 : vector<32x128xf32>
    %c0_26 = arith.constant 0 : index
    %c0_27 = arith.constant 0 : index
    %c0_28 = arith.constant 0 : index
    %52 = vector.load %arg8[%c0_26, %c0_27, %c0_28] : memref<1x32x128xf32, #tpu.memory_space<vmem>>, vector<1x32x128xf32>
    %53 = vector.shape_cast %52 : vector<1x32x128xf32> to vector<32x128xf32>
    %54 = vector.shape_cast %51 : vector<32x128xf32> to vector<1x32x128xf32>
    tpu.vector_store %arg8[%c0_26, %c0_27, %c0_28], %54 {strides = array<i32>} : memref<1x32x128xf32, #tpu.memory_space<vmem>>, vector<1x32x128xf32>,
    return
  }
  func.func @transform_0(%arg0: i32) -> (i32, i32, i32) {
    %c0_i32 = arith.constant 0 : i32
    %c0_i32_0 = arith.constant 0 : i32
    %c0_i32_1 = arith.constant 0 : i32
    return %arg0, %c0_i32, %c0_i32_0 : i32, i32, i32
  }
  func.func @transform_1(%arg0: i32) -> (i32, i32, i32) {
    %c0_i32 = arith.constant 0 : i32
    %c0_i32_0 = arith.constant 0 : i32
    %c0_i32_1 = arith.constant 0 : i32
    return %arg0, %c0_i32, %c0_i32_0 : i32, i32, i32
  }
  func.func @transform_2(%arg0: i32) -> (i32, i32) {
    %c0_i32 = arith.constant 0 : i32
    %c0_i32_0 = arith.constant 0 : i32
    %c0_i32_1 = arith.constant 0 : i32
    return %c0_i32, %c0_i32_0 : i32, i32
  }
  func.func @transform_3(%arg0: i32) -> (i32, i32) {
    %c0_i32 = arith.constant 0 : i32
    %c0_i32_0 = arith.constant 0 : i32
    %c0_i32_1 = arith.constant 0 : i32
    return %c0_i32, %c0_i32_0 : i32, i32
  }
  func.func @transform_4(%arg0: i32) -> (i32, i32) {
    %c0_i32 = arith.constant 0 : i32
    %c0_i32_0 = arith.constant 0 : i32
    %c0_i32_1 = arith.constant 0 : i32
    return %c0_i32, %c0_i32_0 : i32, i32
  }
  func.func @transform_5(%arg0: i32) -> (i32, i32) {
    %c0_i32 = arith.constant 0 : i32
    %c0_i32_0 = arith.constant 0 : i32
    %c0_i32_1 = arith.constant 0 : i32
    return %c0_i32, %c0_i32_0 : i32, i32
  }
  func.func @transform_6(%arg0: i32) -> (i32, i32) {
    %c0_i32 = arith.constant 0 : i32
    %c0_i32_0 = arith.constant 0 : i32
    %c0_i32_1 = arith.constant 0 : i32
    return %c0_i32, %c0_i32_0 : i32, i32
  }
  func.func @transform_7(%arg0: i32) -> (i32, i32, i32) {
    %c0_i32 = arith.constant 0 : i32
    %c0_i32_0 = arith.constant 0 : i32
    %c0_i32_1 = arith.constant 0 : i32
    return %arg0, %c0_i32, %c0_i32_0 : i32, i32, i32
  }
}

</mosaic_0001>

<llo_original>
// kernel: tpu_custom_call.1
$region0: #{tpu_custom_call.1}
  #allocation0 [shape = 'u32[]', space=smem, size = 0x4, offset = 0x4, fixed_abs, tag = 'smem constant byte address 0x4 - core index']
  #allocation1 [shape = 'u32[144,128]{1,0:T(1,128)}', space=vmem, size = 0x12000, scoped, tag = 'internal scratch']
  %s0 = inlined_call_operand.vmem [shape: f32[2,8,128], index: 0, kind: input, shape index: {}]
  %s1 = inlined_call_operand.vmem [shape: f32[2,16,128], index: 1, kind: input, shape index: {}]
  %s2 = inlined_call_operand.vmem [shape: bf16[8,16], index: 2, kind: input, shape index: {}]
  %s3 = inlined_call_operand.vmem [shape: f32[8,1], index: 3, kind: input, shape index: {}]
  %s4 = inlined_call_operand.vmem [shape: bf16[32,8], index: 4, kind: input, shape index: {}]
  %s5 = inlined_call_operand.vmem [shape: bf16[32,8], index: 5, kind: input, shape index: {}]
  %s6 = inlined_call_operand.vmem [shape: f32[32,1], index: 6, kind: input, shape index: {}]
  %s7 = inlined_call_operand.hbm [shape: f32[2,32,128], index: 7, kind: output, shape index: {}]
  %s8 = sld [smem:[#allocation0]]
  $region61: #{tpu_custom_call.1} parent=0
    _
  %s10 = ssub.s32 1, %s8
  %s11 = scalar_select 0, %s10, %s8
  $region1: #{tpu_custom_call.1} parent=0
    #allocation2 [shape = 'u8[32768]{0}', space=vmem, size = 0x8000, scoped, tag = 'output window, operand 0']
    #allocation3 [shape = 's32[2]{0}', space=sflag, size = 0x8, scoped, tag = 'scoped memory for tpu_custom_call.1']
    %12 = vsyncpa [#allocation3], 0
    %s13 = scalar_lea.sflag [#allocation3], 1
    %14 = vsyncpa %s13, 0
    loop: start=0, step=1, limit=4
    $region2: #{tpu_custom_call.1} parent=1 // loop_pre_header
      _
    $region3: #{tpu_custom_call.1} parent=1 // loop_header
      %s16 = sphi 0, %s20
      %p17 = scmp.ge.s32.totalorder %s16, 4
      %s26 = sphi 0, %s28
      %s29 = sphi 0, %s26
      %s30 = sphi 0, %s29
      %s46 = sphi 0, %s30
      %s52 = sphi 0, %s54
      %s55 = sphi 0, %s52
      %s56 = sphi 0, %s55
      %s72 = sphi 0, %s56
      %s76 = sphi 0, %s76
      %s78 = sphi 0, %s76
      %s79 = sphi 0, %s78
      %s93 = sphi 0, %s79
      %s97 = sphi 0, %s97
      %s99 = sphi 0, %s97
      %s100 = sphi 0, %s99
      %s114 = sphi 0, %s100
      %s118 = sphi 0, %s118
      %s120 = sphi 0, %s118
      %s121 = sphi 0, %s120
      %s135 = sphi 0, %s121
      %s139 = sphi 0, %s139
      %s141 = sphi 0, %s139
      %s142 = sphi 0, %s141
      %s156 = sphi 0, %s142
      %s160 = sphi 0, %s160
      %s162 = sphi 0, %s160
      %s163 = sphi 0, %s162
      %s177 = sphi 0, %s163
      %s183 = sphi 0, %s185
      %s186 = sphi 0, %s183
      %s187 = sphi 0, %s186
      %s203 = sphi 0, %s187
    $region4: #{tpu_custom_call.1} parent=1 // loop_header_branch
      %19 = sbr.rel (%p17) target = $region8
    $region5: #{tpu_custom_call.1} parent=1 // loop_body
      %s21 = ssub.s32 %s16, 1
      %s22 = ssub.s32 %s16, 2
      %s23 = sadd.s32 %s16, 1
      %s24 = ssub.s32 %s16, %s23
      %p25 = scmp.eq.s32.totalorder %s24, 0
      %s27 = sadd.s32 %s26, 1
      %s28 = scalar_select %p25, %s26, %s27
      %p31 = pneg %p25
      %p32 = scmp.eq.s32.totalorder %s16, 1
      %p33 = por %p31, %p32
      %p34 = scmp.ne.s32.totalorder %s26, %s29
      %p35 = scmp.eq.s32.totalorder %s16, 0
      %p36 = por %p34, %p35
      %p37 = scmp.ne.s32.totalorder %s26, %s29
      %p38 = scmp.eq.s32.totalorder %s21, 1
      %p39 = por %p37, %p38
      %p40 = scmp.ne.s32.totalorder %s29, %s30
      %p41 = scmp.eq.s32.totalorder %s21, 0
      %p42 = por %p40, %p41
      %p43 = scmp.ne.s32.totalorder %s29, %s30
      %p44 = scmp.eq.s32.totalorder %s22, 1
      %p45 = por %p43, %p44
      %p47 = scmp.ne.s32.totalorder %s30, %s46
      %p48 = scmp.eq.s32.totalorder %s22, 0
      %p49 = por %p47, %p48
      %s50 = ssub.s32 %s16, %s23
      %p51 = scmp.eq.s32.totalorder %s50, 0
      %s53 = sadd.s32 %s52, 1
      %s54 = scalar_select %p51, %s52, %s53
      %p57 = pneg %p51
      %p58 = scmp.eq.s32.totalorder %s16, 1
      %p59 = por %p57, %p58
      %p60 = scmp.ne.s32.totalorder %s52, %s55
      %p61 = scmp.eq.s32.totalorder %s16, 0
      %p62 = por %p60, %p61
      %p63 = scmp.ne.s32.totalorder %s52, %s55
      %p64 = scmp.eq.s32.totalorder %s21, 1
      %p65 = por %p63, %p64
      %p66 = scmp.ne.s32.totalorder %s55, %s56
      %p67 = scmp.eq.s32.totalorder %s21, 0
      %p68 = por %p66, %p67
      %p69 = scmp.ne.s32.totalorder %s55, %s56
      %p70 = scmp.eq.s32.totalorder %s22, 1
      %p71 = por %p69, %p70
      %p73 = scmp.ne.s32.totalorder %s56, %s72
      %p74 = scmp.eq.s32.totalorder %s22, 0
      %p75 = por %p73, %p74
      %s77 = sadd.s32 %s76, 1
      %p80 = scmp.eq.s32.totalorder %s16, 1
      %p81 = scmp.ne.s32.totalorder %s76, %s78
      %p82 = scmp.eq.s32.totalorder %s16, 0
      %p83 = por %p81, %p82
      %p84 = scmp.ne.s32.totalorder %s76, %s78
      %p85 = scmp.eq.s32.totalorder %s21, 1
      %p86 = por %p84, %p85
      %p87 = scmp.ne.s32.totalorder %s78, %s79
      %p88 = scmp.eq.s32.totalorder %s21, 0
      %p89 = por %p87, %p88
      %p90 = scmp.ne.s32.totalorder %s78, %s79
      %p91 = scmp.eq.s32.totalorder %s22, 1
      %p92 = por %p90, %p91
      %p94 = scmp.ne.s32.totalorder %s79, %s93
      %p95 = scmp.eq.s32.totalorder %s22, 0
      %p96 = por %p94, %p95
      %s98 = sadd.s32 %s97, 1
      %p101 = scmp.eq.s32.totalorder %s16, 1
      %p102 = scmp.ne.s32.totalorder %s97, %s99
      %p103 = scmp.eq.s32.totalorder %s16, 0
      %p104 = por %p102, %p103
      %p105 = scmp.ne.s32.totalorder %s97, %s99
      %p106 = scmp.eq.s32.totalorder %s21, 1
      %p107 = por %p105, %p106
      %p108 = scmp.ne.s32.totalorder %s99, %s100
      %p109 = scmp.eq.s32.totalorder %s21, 0
      %p110 = por %p108, %p109
      %p111 = scmp.ne.s32.totalorder %s99, %s100
      %p112 = scmp.eq.s32.totalorder %s22, 1
      %p113 = por %p111, %p112
      %p115 = scmp.ne.s32.totalorder %s100, %s114
      %p116 = scmp.eq.s32.totalorder %s22, 0
      %p117 = por %p115, %p116
      %s119 = sadd.s32 %s118, 1
      %p122 = scmp.eq.s32.totalorder %s16, 1
      %p123 = scmp.ne.s32.totalorder %s118, %s120
      %p124 = scmp.eq.s32.totalorder %s16, 0
      %p125 = por %p123, %p124
      %p126 = scmp.ne.s32.totalorder %s118, %s120
      %p127 = scmp.eq.s32.totalorder %s21, 1
      %p128 = por %p126, %p127
      %p129 = scmp.ne.s32.totalorder %s120, %s121
      %p130 = scmp.eq.s32.totalorder %s21, 0
      %p131 = por %p129, %p130
      %p132 = scmp.ne.s32.totalorder %s120, %s121
      %p133 = scmp.eq.s32.totalorder %s22, 1
      %p134 = por %p132, %p133
      %p136 = scmp.ne.s32.totalorder %s121, %s135
      %p137 = scmp.eq.s32.totalorder %s22, 0
      %p138 = por %p136, %p137
      %s140 = sadd.s32 %s139, 1
      %p143 = scmp.eq.s32.totalorder %s16, 1
      %p144 = scmp.ne.s32.totalorder %s139, %s141
      %p145 = scmp.eq.s32.totalorder %s16, 0
      %p146 = por %p144, %p145
      %p147 = scmp.ne.s32.totalorder %s139, %s141
      %p148 = scmp.eq.s32.totalorder %s21, 1
      %p149 = por %p147, %p148
      %p150 = scmp.ne.s32.totalorder %s141, %s142
      %p151 = scmp.eq.s32.totalorder %s21, 0
      %p152 = por %p150, %p151
      %p153 = scmp.ne.s32.totalorder %s141, %s142
      %p154 = scmp.eq.s32.totalorder %s22, 1
      %p155 = por %p153, %p154
      %p157 = scmp.ne.s32.totalorder %s142, %s156
      %p158 = scmp.eq.s32.totalorder %s22, 0
      %p159 = por %p157, %p158
      %s161 = sadd.s32 %s160, 1
      %p164 = scmp.eq.s32.totalorder %s16, 1
      %p165 = scmp.ne.s32.totalorder %s160, %s162
      %p166 = scmp.eq.s32.totalorder %s16, 0
      %p167 = por %p165, %p166
      %p168 = scmp.ne.s32.totalorder %s160, %s162
      %p169 = scmp.eq.s32.totalorder %s21, 1
      %p170 = por %p168, %p169
      %p171 = scmp.ne.s32.totalorder %s162, %s163
      %p172 = scmp.eq.s32.totalorder %s21, 0
      %p173 = por %p171, %p172
      %p174 = scmp.ne.s32.totalorder %s162, %s163
      %p175 = scmp.eq.s32.totalorder %s22, 1
      %p176 = por %p174, %p175
      %p178 = scmp.ne.s32.totalorder %s163, %s177
      %p179 = scmp.eq.s32.totalorder %s22, 0
      %p180 = por %p178, %p179
      %s181 = ssub.s32 %s16, %s23
      %p182 = scmp.eq.s32.totalorder %s181, 0
      %s184 = sadd.s32 %s183, 1
      %s185 = scalar_select %p182, %s183, %s184
      %p188 = pneg %p182
      %p189 = scmp.eq.s32.totalorder %s16, 1
      %p190 = por %p188, %p189
      %p191 = scmp.ne.s32.totalorder %s183, %s186
      %p192 = scmp.eq.s32.totalorder %s16, 0
      %p193 = por %p191, %p192
      %p194 = scmp.ne.s32.totalorder %s183, %s186
      %p195 = scmp.eq.s32.totalorder %s21, 1
      %p196 = por %p194, %p195
      %p197 = scmp.ne.s32.totalorder %s186, %s187
      %p198 = scmp.eq.s32.totalorder %s21, 0
      %p199 = por %p197, %p198
      %p200 = scmp.ne.s32.totalorder %s186, %s187
      %p201 = scmp.eq.s32.totalorder %s22, 1
      %p202 = por %p200, %p201
      %p204 = scmp.ne.s32.totalorder %s187, %s203
      %p205 = scmp.eq.s32.totalorder %s22, 0
      %p206 = por %p204, %p205
      %p207 = scmp.le.s32.totalorder 1, %s16
      %p208 = scmp.lt.s32.totalorder %s16, 3
      %p209 = pnand %p207, %p208
      %p210 = pneg %p209
      // Predicated region
      $region9: #{tpu_custom_call.1} parent=5 // pred_check
        _
      $region10: #{tpu_custom_call.1} parent=5 // pred_check_branch
        %212 = sbr.rel (%p209) target = $region12
      $region11: #{tpu_custom_call.1} parent=5 // pred_region
        %s213 = ssub.s32 %s16, 1
        // Predicated region
        $region13: #{tpu_custom_call.1} parent=11 // pred_check
          %p214 = pneg %p89
        $region14: #{tpu_custom_call.1} parent=11 // pred_check_branch
          %216 = sbr.rel (%p214) target = $region16
        $region15: #{tpu_custom_call.1} parent=11 // pred_region
          _
        $region16: #{tpu_custom_call.1} parent=11 // pred_fallthru
          _
        // Predicated region
        $region17: #{tpu_custom_call.1} parent=11 // pred_check
          %p217 = pneg %p110
        $region18: #{tpu_custom_call.1} parent=11 // pred_check_branch
          %219 = sbr.rel (%p217) target = $region20
        $region19: #{tpu_custom_call.1} parent=11 // pred_region
          _
        $region20: #{tpu_custom_call.1} parent=11 // pred_fallthru
          _
        // Predicated region
        $region21: #{tpu_custom_call.1} parent=11 // pred_check
          %p220 = pneg %p131
        $region22: #{tpu_custom_call.1} parent=11 // pred_check_branch
          %222 = sbr.rel (%p220) target = $region24
        $region23: #{tpu_custom_call.1} parent=11 // pred_region
          _
        $region24: #{tpu_custom_call.1} parent=11 // pred_fallthru
          _
        // Predicated region
        $region25: #{tpu_custom_call.1} parent=11 // pred_check
          %p223 = pneg %p152
        $region26: #{tpu_custom_call.1} parent=11 // pred_check_branch
          %225 = sbr.rel (%p223) target = $region28
        $region27: #{tpu_custom_call.1} parent=11 // pred_region
          _
        $region28: #{tpu_custom_call.1} parent=11 // pred_fallthru
          _
        // Predicated region
        $region29: #{tpu_custom_call.1} parent=11 // pred_check
          %p226 = pneg %p173
        $region30: #{tpu_custom_call.1} parent=11 // pred_check_branch
          %228 = sbr.rel (%p226) target = $region32
        $region31: #{tpu_custom_call.1} parent=11 // pred_region
          _
        $region32: #{tpu_custom_call.1} parent=11 // pred_fallthru
          _
      $region12: #{tpu_custom_call.1} parent=5 // pred_fallthru
        _
      %p229 = scmp.lt.s32.totalorder %s16, 2
      // Predicated region
      $region33: #{tpu_custom_call.1} parent=5 // pred_check
        %p230 = pneg %p229
      $region34: #{tpu_custom_call.1} parent=5 // pred_check_branch
        %232 = sbr.rel (%p230) target = $region36
      $region35: #{tpu_custom_call.1} parent=5 // pred_region
        // Predicated region
        $region37: #{tpu_custom_call.1} parent=35 // pred_check
          %p233 = pneg %p36
        $region38: #{tpu_custom_call.1} parent=35 // pred_check_branch
          %235 = sbr.rel (%p233) target = $region40
        $region39: #{tpu_custom_call.1} parent=35 // pred_region
          %p236 = scmp.lt.s32.totalorder %s16, 1
          %s237 = scalar_select %p236, %s16, 1
          %s238 = smul.addr %s237, 8
          %s239 = scalar_lea.vmem %s0, %s238
        $region40: #{tpu_custom_call.1} parent=35 // pred_fallthru
          _
        // Predicated region
        $region41: #{tpu_custom_call.1} parent=35 // pred_check
          %p240 = pneg %p62
        $region42: #{tpu_custom_call.1} parent=35 // pred_check_branch
          %242 = sbr.rel (%p240) target = $region44
        $region43: #{tpu_custom_call.1} parent=35 // pred_region
          %p243 = scmp.lt.s32.totalorder %s16, 1
          %s244 = scalar_select %p243, %s16, 1
          %s245 = smul.addr %s244, 2
          %s246 = smul.addr %s245, 8
          %s247 = scalar_lea.vmem %s1, %s246
        $region44: #{tpu_custom_call.1} parent=35 // pred_fallthru
          _
      $region36: #{tpu_custom_call.1} parent=5 // pred_fallthru
        _
      %p248 = scmp.le.s32.totalorder 1, %s16
      %p249 = scmp.lt.s32.totalorder %s16, 3
      %p250 = pnand %p248, %p249
      %p251 = pneg %p250
      // Predicated region
      $region45: #{tpu_custom_call.1} parent=5 // pred_check
        _
      $region46: #{tpu_custom_call.1} parent=5 // pred_check_branch
        %253 = sbr.rel (%p250) target = $region48
      $region47: #{tpu_custom_call.1} parent=5 // pred_region
        %s254 = ssub.s32 %s16, 1
        %p255 = scmp.lt.s32.totalorder %s21, 1
        %s256 = scalar_select %p255, %s21, 1
        %s257 = smul.addr %s256, 8
        %s258 = scalar_lea.vmem %s0, %s257
        %p259 = pneg %p42
        %p260 = pneg %p39
        %p261 = scmp.lt.s32.totalorder %s21, 1
        %s262 = scalar_select %p261, %s21, 1
        %s263 = smul.addr %s262, 2
        %s264 = smul.addr %s263, 8
        %s265 = scalar_lea.vmem %s1, %s264
        %p266 = pneg %p68
        %p267 = pneg %p65
        %p268 = pneg %p89
        %p269 = pneg %p86
        %p270 = pneg %p110
        %p271 = pneg %p107
        %p272 = pneg %p131
        %p273 = pneg %p128
        %p274 = pneg %p152
        %p275 = pneg %p149
        %p276 = pneg %p173
        %p277 = pneg %p170
        %p278 = pneg %p199
        %p279 = pneg %p196
        %s280 = sand.u32 %s186, 1
        %s281 = scalar_lea.sflag [#allocation3], %s280
        %s282 = sand.u32 %s186, 1
        %s283 = smul.addr %s282, 32
        %s284 = scalar_lea.vmem [#allocation2], %s283
        %p285 = scmp.lt.s32.totalorder %s21, 1
        %s286 = scalar_select %p285, %s21, 1
        %s287 = smul.addr %s286, 8
        %s288 = scalar_lea.vmem %s0, %s287
        %p289 = scmp.lt.s32.totalorder %s21, 1
        %s290 = scalar_select %p289, %s21, 1
        %s291 = smul.addr %s290, 2
        %s292 = smul.addr %s291, 8
        %s293 = scalar_lea.vmem %s1, %s292
        %v295 = vld [vmem:[%s288] sm:$0xff]
        %v296 = vld [vmem:[%s293] sm:$0xff]
        %v297 = vld [vmem:[%s293 + $0x8] sm:$0xff]
        %v298 = vpack.c.bf16 %v295, %v295
        %v299 = vld [vmem:[%s2] sm:$0xf]
        %v300 = vpack.c.bf16 %v297, %v296
        %v301 = vld [vmem:[%s3] sm:$0xff]
        %303 = vset.pattern.permute.xlu0 0
        %304 = vperm.xlu0 %303, %v301
        %v305 = vpop.permute.xlu0 %304
        %vm307 = vcmask 130048
        %v309 = vsel %vm307, %v299, 0
        %311 = vmatprep.subr.bf16.mxu0 0
        %312 = vmatpush1.bf16.msra.mxu0 %v300
        %313 = vmatprep.subr.bf16.mxu0 0
        %314 = vmatpush1.bf16.msra.mxu0 0
        %315 = vmatprep.subr.bf16.mxu0 0
        %316 = vmatpush1.bf16.msra.mxu0 0
        %317 = vmatprep.subr.bf16.mxu0 0
        %318 = vmatpush1.bf16.msra.mxu0 0
        %319 = vmatprep.subr.bf16.mxu0 0
        %320 = vmatpush1.bf16.msra.mxu0 0
        %321 = vmatprep.subr.bf16.mxu0 0
        %322 = vmatpush1.bf16.msra.mxu0 0
        %323 = vmatprep.subr.bf16.mxu0 0
        %324 = vmatpush1.bf16.msra.mxu0 0
        %325 = vmatprep.subr.bf16.mxu0 0
        %326 = vmatpush1.bf16.msra.mxu0 0
        %327 = vmatprep.subr.bf16.mxu0 0
        %328 = vmatpush1.bf16.msra.mxu0 0
        %329 = vmatprep.subr.bf16.mxu0 0
        %330 = vmatpush1.bf16.msra.mxu0 0
        %331 = vmatprep.subr.bf16.mxu0 0
        %332 = vmatpush1.bf16.msra.mxu0 0
        %333 = vmatprep.subr.bf16.mxu0 0
        %334 = vmatpush1.bf16.msra.mxu0 0
        %335 = vmatprep.subr.bf16.mxu0 0
        %336 = vmatpush1.bf16.msra.mxu0 0
        %337 = vmatprep.subr.bf16.mxu0 0
        %338 = vmatpush1.bf16.msra.mxu0 0
        %339 = vmatprep.subr.bf16.mxu0 0
        %340 = vmatpush1.bf16.msra.mxu0 0
        %341 = vmatprep.subr.bf16.mxu0 0
        %342 = vmatpush1.bf16.msra.mxu0 0
        %343 = vmatprep.mubr.bf16.mxu0 0
        %344 = vmatmul.mubr.bf16.gmra.mrb[0].mxu0 %v309
        %v345 = vpop.f32.mrb[0].mxu0
        %v346 = vadd.f32 %v305, %v345
        %v347 = vpop.f32.mrb[0].mxu0
        %v348 = vpop.f32.mrb[0].mxu0
        %v349 = vpop.f32.mrb[0].mxu0
        %350 = vdwg.mxu0
        %v351 = vpack.c.bf16 %v346, %v346
        %352 = vxpose.xlu0.c.b16.start [1/8] %v298, 128
        %353 = vxpose.xlu0.c.b16.cont [2/8] 0, 128
        %354 = vxpose.xlu0.c.b16.cont [3/8] 0, 128
        %355 = vxpose.xlu0.c.b16.cont [4/8] 0, 128
        %356 = vxpose.xlu0.c.b16.cont [5/8] 0, 128
        %357 = vxpose.xlu0.c.b16.cont [6/8] 0, 128
        %358 = vxpose.xlu0.c.b16.cont [7/8] 0, 128
        %359 = vxpose.xlu0.c.b16.end [8/8] 0, 128
        %v360 = vpop.trf.xlu0
        %v361 = vpop.trf.xlu0
        %v362 = vpop.trf.xlu0
        %v363 = vpop.trf.xlu0
        %v364 = vpop.trf.xlu0
        %v365 = vpop.trf.xlu0
        %v366 = vpop.trf.xlu0
        %v367 = vpop.trf.xlu0
        %vm368 = vcmask 64512
        %v370 = vsel %vm368, %v360, 0
        %v373 = vsel %vm368, %v361, 0
        %v376 = vsel %vm368, %v362, 0
        %v379 = vsel %vm368, %v363, 0
        %v382 = vsel %vm368, %v364, 0
        %v385 = vsel %vm368, %v365, 0
        %v388 = vsel %vm368, %v366, 0
        %v391 = vsel %vm368, %v367, 0
        %vm393 = vcmask 1043456
        %v395 = vsel %vm393, %v351, 0
        %397 = vmatprep.subr.bf16.mxu0 0
        %398 = vmatpush1.bf16.msra.mxu0 %v395
        %399 = vmatprep.subr.bf16.mxu0 0
        %400 = vmatpush1.bf16.msra.mxu0 0
        %401 = vmatprep.subr.bf16.mxu0 0
        %402 = vmatpush1.bf16.msra.mxu0 0
        %403 = vmatprep.subr.bf16.mxu0 0
        %404 = vmatpush1.bf16.msra.mxu0 0
        %405 = vmatprep.subr.bf16.mxu0 0
        %406 = vmatpush1.bf16.msra.mxu0 0
        %407 = vmatprep.subr.bf16.mxu0 0
        %408 = vmatpush1.bf16.msra.mxu0 0
        %409 = vmatprep.subr.bf16.mxu0 0
        %410 = vmatpush1.bf16.msra.mxu0 0
        %411 = vmatprep.subr.bf16.mxu0 0
        %412 = vmatpush1.bf16.msra.mxu0 0
        %413 = vmatprep.subr.bf16.mxu0 0
        %414 = vmatpush1.bf16.msra.mxu0 0
        %415 = vmatprep.subr.bf16.mxu0 0
        %416 = vmatpush1.bf16.msra.mxu0 0
        %417 = vmatprep.subr.bf16.mxu0 0
        %418 = vmatpush1.bf16.msra.mxu0 0
        %419 = vmatprep.subr.bf16.mxu0 0
        %420 = vmatpush1.bf16.msra.mxu0 0
        %421 = vmatprep.subr.bf16.mxu0 0
        %422 = vmatpush1.bf16.msra.mxu0 0
        %423 = vmatprep.subr.bf16.mxu0 0
        %424 = vmatpush1.bf16.msra.mxu0 0
        %425 = vmatprep.subr.bf16.mxu0 0
        %426 = vmatpush1.bf16.msra.mxu0 0
        %427 = vmatprep.subr.bf16.mxu0 0
        %428 = vmatpush1.bf16.msra.mxu0 0
        %429 = vmatprep.mubr.bf16.mxu0 0
        %430 = vmatmul.mubr.bf16.gmra.mrb[0].mxu0 %v370
        %v431 = vpop.f32.mrb[0].mxu0
        %v432 = vadd.f32 0.0, %v431
        %v433 = vpop.f32.mrb[0].mxu0
        %v434 = vpop.f32.mrb[0].mxu0
        %v435 = vadd.f32 0.0, %v434
        %v436 = vpop.f32.mrb[0].mxu0
        %437 = vmatprep.mubr.bf16.mxu0 0
        %438 = vmatmul.mubr.bf16.gmra.mrb[0].mxu0 %v373
        %v439 = vpop.f32.mrb[0].mxu0
        %v440 = vadd.f32 0.0, %v439
        %v441 = vpop.f32.mrb[0].mxu0
        %v442 = vpop.f32.mrb[0].mxu0
        %v443 = vadd.f32 0.0, %v442
        %v444 = vpop.f32.mrb[0].mxu0
        %445 = vmatprep.mubr.bf16.mxu0 0
        %446 = vmatmul.mubr.bf16.gmra.mrb[0].mxu0 %v376
        %v447 = vpop.f32.mrb[0].mxu0
        %v448 = vadd.f32 0.0, %v447
        %v449 = vpop.f32.mrb[0].mxu0
        %v450 = vpop.f32.mrb[0].mxu0
        %v451 = vadd.f32 0.0, %v450
        %v452 = vpop.f32.mrb[0].mxu0
        %453 = vmatprep.mubr.bf16.mxu0 0
        %454 = vmatmul.mubr.bf16.gmra.mrb[0].mxu0 %v379
        %v455 = vpop.f32.mrb[0].mxu0
        %v456 = vadd.f32 0.0, %v455
        %v457 = vpop.f32.mrb[0].mxu0
        %v458 = vpop.f32.mrb[0].mxu0
        %v459 = vadd.f32 0.0, %v458
        %v460 = vpop.f32.mrb[0].mxu0
        %461 = vmatprep.mubr.bf16.mxu0 0
        %462 = vmatmul.mubr.bf16.gmra.mrb[0].mxu0 %v382
        %v463 = vpop.f32.mrb[0].mxu0
        %v464 = vadd.f32 0.0, %v463
        %v465 = vpop.f32.mrb[0].mxu0
        %v466 = vpop.f32.mrb[0].mxu0
        %v467 = vadd.f32 0.0, %v466
        %v468 = vpop.f32.mrb[0].mxu0
        %469 = vmatprep.mubr.bf16.mxu0 0
        %470 = vmatmul.mubr.bf16.gmra.mrb[0].mxu0 %v385
        %v471 = vpop.f32.mrb[0].mxu0
        %v472 = vadd.f32 0.0, %v471
        %v473 = vpop.f32.mrb[0].mxu0
        %v474 = vpop.f32.mrb[0].mxu0
        %v475 = vadd.f32 0.0, %v474
        %v476 = vpop.f32.mrb[0].mxu0
        %477 = vmatprep.mubr.bf16.mxu0 0
        %478 = vmatmul.mubr.bf16.gmra.mrb[0].mxu0 %v388
        %v479 = vpop.f32.mrb[0].mxu0
        %v480 = vadd.f32 0.0, %v479
        %v481 = vpop.f32.mrb[0].mxu0
        %v482 = vpop.f32.mrb[0].mxu0
        %v483 = vadd.f32 0.0, %v482
        %v484 = vpop.f32.mrb[0].mxu0
        %485 = vmatprep.mubr.bf16.mxu0 0
        %486 = vmatmul.mubr.bf16.gmra.mrb[0].mxu0 %v391
        %v487 = vpop.f32.mrb[0].mxu0
        %v488 = vadd.f32 0.0, %v487
        %v489 = vpop.f32.mrb[0].mxu0
        %v490 = vpop.f32.mrb[0].mxu0
        %v491 = vadd.f32 0.0, %v490
        %v492 = vpop.f32.mrb[0].mxu0
        %493 = vdwg.mxu0
        %v494 = vmul.f32 %v432, 0.35355338
        %v495 = vmul.f32 %v435, 0.35355338
        %v496 = vmul.f32 %v440, 0.35355338
        %v497 = vmul.f32 %v443, 0.35355338
        %v498 = vmul.f32 %v448, 0.35355338
        %v499 = vmul.f32 %v451, 0.35355338
        %v500 = vmul.f32 %v456, 0.35355338
        %v501 = vmul.f32 %v459, 0.35355338
        %v502 = vmul.f32 %v464, 0.35355338
        %v503 = vmul.f32 %v467, 0.35355338
        %v504 = vmul.f32 %v472, 0.35355338
        %v505 = vmul.f32 %v475, 0.35355338
        %v506 = vmul.f32 %v480, 0.35355338
        %v507 = vmul.f32 %v483, 0.35355338
        %v508 = vmul.f32 %v488, 0.35355338
        %v509 = vmul.f32 %v491, 0.35355338
        %v510 = vmax.f32 %v494, %v498
        %v511 = vmax.f32 %v495, %v499
        %v512 = vmax.f32 %v496, %v500
        %v513 = vmax.f32 %v497, %v501
        %v514 = vmax.f32 %v510, %v502
        %v515 = vmax.f32 %v511, %v503
        %v516 = vmax.f32 %v512, %v504
        %v517 = vmax.f32 %v513, %v505
        %v518 = vmax.f32 %v514, %v506
        %v519 = vmax.f32 %v515, %v507
        %v520 = vmax.f32 %v516, %v508
        %v521 = vmax.f32 %v517, %v509
        %v522 = vmax.f32 %v518, %v519
        %v523 = vmax.f32 %v520, %v521
        %v524 = vmax.f32 %v522, %v523
        %v525 = vrot.slane %v524, 4
        %v526 = vmax.f32 %v524, %v525
        %v527 = vrot.slane %v526, 2
        %v528 = vmax.f32 %v526, %v527
        %v529 = vrot.slane %v528, 1
        %v530 = vmax.f32 %v528, %v529
        %v531 = vsub.f32 %v494, %v530
        %v532 = vsub.f32 %v495, %v530
        %v533 = vsub.f32 %v496, %v530
        %v534 = vsub.f32 %v497, %v530
        %v535 = vsub.f32 %v498, %v530
        %v536 = vsub.f32 %v499, %v530
        %v537 = vsub.f32 %v500, %v530
        %v538 = vsub.f32 %v501, %v530
        %v539 = vsub.f32 %v502, %v530
        %v540 = vsub.f32 %v503, %v530
        %v541 = vsub.f32 %v504, %v530
        %v542 = vsub.f32 %v505, %v530
        %v543 = vsub.f32 %v506, %v530
        %v544 = vsub.f32 %v507, %v530
        %v545 = vsub.f32 %v508, %v530
        %v546 = vsub.f32 %v509, %v530
        %v547 = vmul.f32 %v531, 1.442695
        %v548 = vpow.pop %v547
        %v549 = vmul.f32 %v532, 1.442695
        %v550 = vpow.pop %v549
        %v551 = vmul.f32 %v533, 1.442695
        %v552 = vpow.pop %v551
        %v553 = vmul.f32 %v534, 1.442695
        %v554 = vpow.pop %v553
        %v555 = vmul.f32 %v535, 1.442695
        %v556 = vpow.pop %v555
        %v557 = vmul.f32 %v536, 1.442695
        %v558 = vpow.pop %v557
        %v559 = vmul.f32 %v537, 1.442695
        %v560 = vpow.pop %v559
        %v561 = vmul.f32 %v538, 1.442695
        %v562 = vpow.pop %v561
        %v563 = vmul.f32 %v539, 1.442695
        %v564 = vpow.pop %v563
        %v565 = vmul.f32 %v540, 1.442695
        %v566 = vpow.pop %v565
        %v567 = vmul.f32 %v541, 1.442695
        %v568 = vpow.pop %v567
        %v569 = vmul.f32 %v542, 1.442695
        %v570 = vpow.pop %v569
        %v571 = vmul.f32 %v543, 1.442695
        %v572 = vpow.pop %v571
        %v573 = vmul.f32 %v544, 1.442695
        %v574 = vpow.pop %v573
        %v575 = vmul.f32 %v545, 1.442695
        %v576 = vpow.pop %v575
        %v577 = vmul.f32 %v546, 1.442695
        %v578 = vpow.pop %v577
        %v579 = vadd.f32 %v548, %v550
        %v580 = vadd.f32 %v579, %v552
        %v581 = vadd.f32 %v580, %v554
        %v582 = vadd.f32 %v581, %v556
        %v583 = vadd.f32 %v582, %v558
        %v584 = vadd.f32 %v583, %v560
        %v585 = vadd.f32 %v584, %v562
        %v586 = vadd.f32 %v585, %v564
        %v587 = vadd.f32 %v586, %v566
        %v588 = vadd.f32 %v587, %v568
        %v589 = vadd.f32 %v588, %v570
        %v590 = vadd.f32 %v589, %v572
        %v591 = vadd.f32 %v590, %v574
        %v592 = vadd.f32 %v591, %v576
        %v593 = vadd.f32 %v592, %v578
        %v594 = vrot.slane %v593, 4
        %v595 = vadd.f32 %v593, %v594
        %v596 = vrot.slane %v595, 2
        %v597 = vadd.f32 %v595, %v596
        %v598 = vrot.slane %v597, 1
        %v599 = vadd.f32 %v597, %v598
        %v600 = vrcp.pop %v599
        %v601 = vmul.f32 %v548, %v600
        %v602 = vmul.f32 %v550, %v600
        %v603 = vmul.f32 %v552, %v600
        %v604 = vmul.f32 %v554, %v600
        %v605 = vmul.f32 %v556, %v600
        %v606 = vmul.f32 %v558, %v600
        %v607 = vmul.f32 %v560, %v600
        %v608 = vmul.f32 %v562, %v600
        %v609 = vmul.f32 %v564, %v600
        %v610 = vmul.f32 %v566, %v600
        %v611 = vmul.f32 %v568, %v600
        %v612 = vmul.f32 %v570, %v600
        %v613 = vmul.f32 %v572, %v600
        %v614 = vmul.f32 %v574, %v600
        %v615 = vmul.f32 %v576, %v600
        %v616 = vmul.f32 %v578, %v600
        %617 = vmax.xlane.f32.xlu0 %v494
        %v618 = vpop.xlane.xlu0 %617
        %619 = vmax.xlane.f32.xlu0 %v495
        %v620 = vpop.xlane.xlu0 %619
        %621 = vmax.xlane.f32.xlu0 %v496
        %v622 = vpop.xlane.xlu0 %621
        %623 = vmax.xlane.f32.xlu0 %v497
        %v624 = vpop.xlane.xlu0 %623
        %625 = vmax.xlane.f32.xlu0 %v498
        %v626 = vpop.xlane.xlu0 %625
        %627 = vmax.xlane.f32.xlu0 %v499
        %v628 = vpop.xlane.xlu0 %627
        %629 = vmax.xlane.f32.xlu0 %v500
        %v630 = vpop.xlane.xlu0 %629
        %631 = vmax.xlane.f32.xlu0 %v501
        %v632 = vpop.xlane.xlu0 %631
        %633 = vmax.xlane.f32.xlu0 %v502
        %v634 = vpop.xlane.xlu0 %633
        %635 = vmax.xlane.f32.xlu0 %v503
        %v636 = vpop.xlane.xlu0 %635
        %637 = vmax.xlane.f32.xlu0 %v504
        %v638 = vpop.xlane.xlu0 %637
        %639 = vmax.xlane.f32.xlu0 %v505
        %v640 = vpop.xlane.xlu0 %639
        %641 = vmax.xlane.f32.xlu0 %v506
        %v642 = vpop.xlane.xlu0 %641
        %643 = vmax.xlane.f32.xlu0 %v507
        %v644 = vpop.xlane.xlu0 %643
        %645 = vmax.xlane.f32.xlu0 %v508
        %v646 = vpop.xlane.xlu0 %645
        %647 = vmax.xlane.f32.xlu0 %v509
        %v648 = vpop.xlane.xlu0 %647
        %v649 = vsub.f32 %v494, %v618
        %v650 = vsub.f32 %v495, %v620
        %v651 = vsub.f32 %v496, %v622
        %v652 = vsub.f32 %v497, %v624
        %v653 = vsub.f32 %v498, %v626
        %v654 = vsub.f32 %v499, %v628
        %v655 = vsub.f32 %v500, %v630
        %v656 = vsub.f32 %v501, %v632
        %v657 = vsub.f32 %v502, %v634
        %v658 = vsub.f32 %v503, %v636
        %v659 = vsub.f32 %v504, %v638
        %v660 = vsub.f32 %v505, %v640
        %v661 = vsub.f32 %v506, %v642
        %v662 = vsub.f32 %v507, %v644
        %v663 = vsub.f32 %v508, %v646
        %v664 = vsub.f32 %v509, %v648
        %v665 = vmul.f32 %v649, 1.442695
        %v666 = vpow.pop %v665
        %v667 = vmul.f32 %v650, 1.442695
        %v668 = vpow.pop %v667
        %v669 = vmul.f32 %v651, 1.442695
        %v670 = vpow.pop %v669
        %v671 = vmul.f32 %v652, 1.442695
        %v672 = vpow.pop %v671
        %v673 = vmul.f32 %v653, 1.442695
        %v674 = vpow.pop %v673
        %v675 = vmul.f32 %v654, 1.442695
        %v676 = vpow.pop %v675
        %v677 = vmul.f32 %v655, 1.442695
        %v678 = vpow.pop %v677
        %v679 = vmul.f32 %v656, 1.442695
        %v680 = vpow.pop %v679
        %v681 = vmul.f32 %v657, 1.442695
        %v682 = vpow.pop %v681
        %v683 = vmul.f32 %v658, 1.442695
        %v684 = vpow.pop %v683
        %v685 = vmul.f32 %v659, 1.442695
        %v686 = vpow.pop %v685
        %v687 = vmul.f32 %v660, 1.442695
        %v688 = vpow.pop %v687
        %v689 = vmul.f32 %v661, 1.442695
        %v690 = vpow.pop %v689
        %v691 = vmul.f32 %v662, 1.442695
        %v692 = vpow.pop %v691
        %v693 = vmul.f32 %v663, 1.442695
        %v694 = vpow.pop %v693
        %v695 = vmul.f32 %v664, 1.442695
        %v696 = vpow.pop %v695
        %697 = vadd.xlane.f32.xlu0 %v666
        %v698 = vpop.xlane.xlu0 %697
        %699 = vadd.xlane.f32.xlu0 %v668
        %v700 = vpop.xlane.xlu0 %699
        %701 = vadd.xlane.f32.xlu0 %v670
        %v702 = vpop.xlane.xlu0 %701
        %703 = vadd.xlane.f32.xlu0 %v672
        %v704 = vpop.xlane.xlu0 %703
        %705 = vadd.xlane.f32.xlu0 %v674
        %v706 = vpop.xlane.xlu0 %705
        %707 = vadd.xlane.f32.xlu0 %v676
        %v708 = vpop.xlane.xlu0 %707
        %709 = vadd.xlane.f32.xlu0 %v678
        %v710 = vpop.xlane.xlu0 %709
        %711 = vadd.xlane.f32.xlu0 %v680
        %v712 = vpop.xlane.xlu0 %711
        %713 = vadd.xlane.f32.xlu0 %v682
        %v714 = vpop.xlane.xlu0 %713
        %715 = vadd.xlane.f32.xlu0 %v684
        %v716 = vpop.xlane.xlu0 %715
        %717 = vadd.xlane.f32.xlu0 %v686
        %v718 = vpop.xlane.xlu0 %717
        %719 = vadd.xlane.f32.xlu0 %v688
        %v720 = vpop.xlane.xlu0 %719
        %721 = vadd.xlane.f32.xlu0 %v690
        %v722 = vpop.xlane.xlu0 %721
        %723 = vadd.xlane.f32.xlu0 %v692
        %v724 = vpop.xlane.xlu0 %723
        %725 = vadd.xlane.f32.xlu0 %v694
        %v726 = vpop.xlane.xlu0 %725
        %727 = vadd.xlane.f32.xlu0 %v696
        %v728 = vpop.xlane.xlu0 %727
        %v729 = vrcp.pop %v698
        %v730 = vrcp.pop %v700
        %v731 = vrcp.pop %v702
        %v732 = vrcp.pop %v704
        %v733 = vrcp.pop %v706
        %v734 = vrcp.pop %v708
        %v735 = vrcp.pop %v710
        %v736 = vrcp.pop %v712
        %v737 = vrcp.pop %v714
        %v738 = vrcp.pop %v716
        %v739 = vrcp.pop %v718
        %v740 = vrcp.pop %v720
        %v741 = vrcp.pop %v722
        %v742 = vrcp.pop %v724
        %v743 = vrcp.pop %v726
        %v744 = vrcp.pop %v728
        %v745 = vmul.f32 %v666, %v729
        %v746 = vmul.f32 %v668, %v730
        %v747 = vmul.f32 %v670, %v731
        %v748 = vmul.f32 %v672, %v732
        %v749 = vmul.f32 %v674, %v733
        %v750 = vmul.f32 %v676, %v734
        %v751 = vmul.f32 %v678, %v735
        %v752 = vmul.f32 %v680, %v736
        %v753 = vmul.f32 %v682, %v737
        %v754 = vmul.f32 %v684, %v738
        %v755 = vmul.f32 %v686, %v739
        %v756 = vmul.f32 %v688, %v740
        %v757 = vmul.f32 %v690, %v741
        %v758 = vmul.f32 %v692, %v742
        %v759 = vmul.f32 %v694, %v743
        %v760 = vmul.f32 %v696, %v744
        %v761 = vpack.c.bf16 %v602, %v601
        %v762 = vpack.c.bf16 %v604, %v603
        %v763 = vpack.c.bf16 %v606, %v605
        %v764 = vpack.c.bf16 %v608, %v607
        %v765 = vpack.c.bf16 %v610, %v609
        %v766 = vpack.c.bf16 %v612, %v611
        %v767 = vpack.c.bf16 %v614, %v613
        %v768 = vpack.c.bf16 %v616, %v615
        %769 = vmatprep.subr.bf16.mxu0 0
        %770 = vmatpush1.bf16.xpose.msra.mxu0 %v761
        %771 = vmatprep.subr.bf16.mxu0 0
        %772 = vmatpush1.bf16.xpose.msra.mxu0 %v762
        %773 = vmatprep.subr.bf16.mxu0 0
        %774 = vmatpush1.bf16.xpose.msra.mxu0 %v763
        %775 = vmatprep.subr.bf16.mxu0 0
        %776 = vmatpush1.bf16.xpose.msra.mxu0 %v764
        %777 = vmatprep.subr.bf16.mxu0 0
        %778 = vmatpush1.bf16.xpose.msra.mxu0 %v765
        %779 = vmatprep.subr.bf16.mxu0 0
        %780 = vmatpush1.bf16.xpose.msra.mxu0 %v766
        %781 = vmatprep.subr.bf16.mxu0 0
        %782 = vmatpush1.bf16.xpose.msra.mxu0 %v767
        %783 = vmatprep.subr.bf16.mxu0 0
        %784 = vmatpush1.bf16.xpose.msra.mxu0 %v768
        %785 = vmatprep.subr.bf16.mxu0 0
        %786 = vmatpush1.bf16.xpose.msra.mxu0 0
        %787 = vmatprep.subr.bf16.mxu0 0
        %788 = vmatpush1.bf16.xpose.msra.mxu0 0
        %789 = vmatprep.subr.bf16.mxu0 0
        %790 = vmatpush1.bf16.xpose.msra.mxu0 0
        %791 = vmatprep.subr.bf16.mxu0 0
        %792 = vmatpush1.bf16.xpose.msra.mxu0 0
        %793 = vmatprep.subr.bf16.mxu0 0
        %794 = vmatpush1.bf16.xpose.msra.mxu0 0
        %795 = vmatprep.subr.bf16.mxu0 0
        %796 = vmatpush1.bf16.xpose.msra.mxu0 0
        %797 = vmatprep.subr.bf16.mxu0 0
        %798 = vmatpush1.bf16.xpose.msra.mxu0 0
        %799 = vmatprep.subr.bf16.mxu0 0
        %800 = vmatpush1.bf16.xpose.msra.mxu0 0
        %801 = vmatprep.mubr.bf16.mxu0 0
        %802 = vmatmul.mubr.bf16.gmra.mrb[0].mxu0 %v298
        %v803 = vpop.f32.mrb[0].mxu0
        %v804 = vadd.f32 0.0, %v803
        %v805 = vpop.f32.mrb[0].mxu0
        %v806 = vpop.f32.mrb[0].mxu0
        %v807 = vpop.f32.mrb[0].mxu0
        %808 = vdwg.mxu0
        %v809 = vpack.c.bf16 %v746, %v745
        %v810 = vpack.c.bf16 %v748, %v747
        %v811 = vpack.c.bf16 %v750, %v749
        %v812 = vpack.c.bf16 %v752, %v751
        %v813 = vpack.c.bf16 %v754, %v753
        %v814 = vpack.c.bf16 %v756, %v755
        %v815 = vpack.c.bf16 %v758, %v757
        %v816 = vpack.c.bf16 %v760, %v759
        %817 = vmatprep.subr.bf16.mxu0 0
        %818 = vmatpush1.bf16.msra.mxu0 %v809
        %819 = vmatprep.subr.bf16.mxu0 0
        %820 = vmatpush1.bf16.msra.mxu0 %v810
        %821 = vmatprep.subr.bf16.mxu0 0
        %822 = vmatpush1.bf16.msra.mxu0 %v811
        %823 = vmatprep.subr.bf16.mxu0 0
        %824 = vmatpush1.bf16.msra.mxu0 %v812
        %825 = vmatprep.subr.bf16.mxu0 0
        %826 = vmatpush1.bf16.msra.mxu0 %v813
        %827 = vmatprep.subr.bf16.mxu0 0
        %828 = vmatpush1.bf16.msra.mxu0 %v814
        %829 = vmatprep.subr.bf16.mxu0 0
        %830 = vmatpush1.bf16.msra.mxu0 %v815
        %831 = vmatprep.subr.bf16.mxu0 0
        %832 = vmatpush1.bf16.msra.mxu0 %v816
        %833 = vmatprep.subr.bf16.mxu0 0
        %834 = vmatpush1.bf16.msra.mxu0 0
        %835 = vmatprep.subr.bf16.mxu0 0
        %836 = vmatpush1.bf16.msra.mxu0 0
        %837 = vmatprep.subr.bf16.mxu0 0
        %838 = vmatpush1.bf16.msra.mxu0 0
        %839 = vmatprep.subr.bf16.mxu0 0
        %840 = vmatpush1.bf16.msra.mxu0 0
        %841 = vmatprep.subr.bf16.mxu0 0
        %842 = vmatpush1.bf16.msra.mxu0 0
        %843 = vmatprep.subr.bf16.mxu0 0
        %844 = vmatpush1.bf16.msra.mxu0 0
        %845 = vmatprep.subr.bf16.mxu0 0
        %846 = vmatpush1.bf16.msra.mxu0 0
        %847 = vmatprep.subr.bf16.mxu0 0
        %848 = vmatpush1.bf16.msra.mxu0 0
        %849 = vmatprep.mubr.bf16.mxu0 0
        %850 = vmatmul.mubr.bf16.gmra.mrb[0].mxu0 %v351
        %v851 = vpop.f32.mrb[0].mxu0
        %v852 = vadd.f32 0.0, %v851
        %v853 = vpop.f32.mrb[0].mxu0
        %v854 = vpop.f32.mrb[0].mxu0
        %v855 = vpop.f32.mrb[0].mxu0
        %856 = vdwg.mxu0
        %v857 = vld [vmem:[%s4] sm:$0xf]
        %v858 = vld [vmem:[%s4 + $0x4] sm:$0xf]
        %v859 = vld [vmem:[%s4 + $0x8] sm:$0xf]
        %v860 = vld [vmem:[%s4 + $0xc] sm:$0xf]
        %v861 = vpack.c.bf16 %v804, %v804
        %v862 = vld [vmem:[%s5] sm:$0xf]
        %v863 = vld [vmem:[%s5 + $0x4] sm:$0xf]
        %v864 = vld [vmem:[%s5 + $0x8] sm:$0xf]
        %v865 = vld [vmem:[%s5 + $0xc] sm:$0xf]
        %v866 = vpack.c.bf16 %v852, %v852
        %v871 = vunpack.c.l.b16 %v862
        %v872 = vunpack.c.l.b16 %v863
        %v873 = vunpack.c.l.b16 %v864
        %v874 = vunpack.c.l.b16 %v865
        %v875 = vpack.c.b16 %v872, %v871
        %v876 = vpack.c.b16 %v874, %v873
        %v878 = vsel %vm368, %v875, 0
        %v881 = vsel %vm368, %v876, 0
        %v884 = vsel %vm393, %v866, 0
        %886 = vmatprep.subr.bf16.mxu0 0
        %887 = vmatpush1.bf16.msra.mxu0 %v884
        %888 = vmatprep.subr.bf16.mxu0 0
        %889 = vmatpush1.bf16.msra.mxu0 0
        %890 = vmatprep.subr.bf16.mxu0 0
        %891 = vmatpush1.bf16.msra.mxu0 0
        %892 = vmatprep.subr.bf16.mxu0 0
        %893 = vmatpush1.bf16.msra.mxu0 0
        %894 = vmatprep.subr.bf16.mxu0 0
        %895 = vmatpush1.bf16.msra.mxu0 0
        %896 = vmatprep.subr.bf16.mxu0 0
        %897 = vmatpush1.bf16.msra.mxu0 0
        %898 = vmatprep.subr.bf16.mxu0 0
        %899 = vmatpush1.bf16.msra.mxu0 0
        %900 = vmatprep.subr.bf16.mxu0 0
        %901 = vmatpush1.bf16.msra.mxu0 0
        %902 = vmatprep.subr.bf16.mxu0 0
        %903 = vmatpush1.bf16.msra.mxu0 0
        %904 = vmatprep.subr.bf16.mxu0 0
        %905 = vmatpush1.bf16.msra.mxu0 0
        %906 = vmatprep.subr.bf16.mxu0 0
        %907 = vmatpush1.bf16.msra.mxu0 0
        %908 = vmatprep.subr.bf16.mxu0 0
        %909 = vmatpush1.bf16.msra.mxu0 0
        %910 = vmatprep.subr.bf16.mxu0 0
        %911 = vmatpush1.bf16.msra.mxu0 0
        %912 = vmatprep.subr.bf16.mxu0 0
        %913 = vmatpush1.bf16.msra.mxu0 0
        %914 = vmatprep.subr.bf16.mxu0 0
        %915 = vmatpush1.bf16.msra.mxu0 0
        %916 = vmatprep.subr.bf16.mxu0 0
        %917 = vmatpush1.bf16.msra.mxu0 0
        %918 = vmatprep.mubr.bf16.mxu0 0
        %919 = vmatmul.mubr.bf16.gmra.mrb[0].mxu0 %v878
        %v920 = vpop.f32.mrb[0].mxu0
        %v921 = vadd.f32 0.0, %v920
        %v922 = vpop.f32.mrb[0].mxu0
        %v923 = vpop.f32.mrb[0].mxu0
        %v924 = vadd.f32 0.0, %v923
        %v925 = vpop.f32.mrb[0].mxu0
        %926 = vmatprep.mubr.bf16.mxu0 0
        %927 = vmatmul.mubr.bf16.gmra.mrb[0].mxu0 %v881
        %v928 = vpop.f32.mrb[0].mxu0
        %v929 = vadd.f32 0.0, %v928
        %v930 = vpop.f32.mrb[0].mxu0
        %v931 = vpop.f32.mrb[0].mxu0
        %v932 = vadd.f32 0.0, %v931
        %v933 = vpop.f32.mrb[0].mxu0
        %934 = vdwg.mxu0
        %v939 = vunpack.c.l.b16 %v857
        %v940 = vunpack.c.l.b16 %v858
        %v941 = vunpack.c.l.b16 %v859
        %v942 = vunpack.c.l.b16 %v860
        %v943 = vpack.c.b16 %v940, %v939
        %v944 = vpack.c.b16 %v942, %v941
        %v946 = vsel %vm368, %v943, 0
        %v949 = vsel %vm368, %v944, 0
        %v952 = vsel %vm393, %v861, 0
        %954 = vmatprep.subr.bf16.mxu0 0
        %955 = vmatpush1.bf16.msra.mxu0 %v952
        %956 = vmatprep.subr.bf16.mxu0 0
        %957 = vmatpush1.bf16.msra.mxu0 0
        %958 = vmatprep.subr.bf16.mxu0 0
        %959 = vmatpush1.bf16.msra.mxu0 0
        %960 = vmatprep.subr.bf16.mxu0 0
        %961 = vmatpush1.bf16.msra.mxu0 0
        %962 = vmatprep.subr.bf16.mxu0 0
        %963 = vmatpush1.bf16.msra.mxu0 0
        %964 = vmatprep.subr.bf16.mxu0 0
        %965 = vmatpush1.bf16.msra.mxu0 0
        %966 = vmatprep.subr.bf16.mxu0 0
        %967 = vmatpush1.bf16.msra.mxu0 0
        %968 = vmatprep.subr.bf16.mxu0 0
        %969 = vmatpush1.bf16.msra.mxu0 0
        %970 = vmatprep.subr.bf16.mxu0 0
        %971 = vmatpush1.bf16.msra.mxu0 0
        %972 = vmatprep.subr.bf16.mxu0 0
        %973 = vmatpush1.bf16.msra.mxu0 0
        %974 = vmatprep.subr.bf16.mxu0 0
        %975 = vmatpush1.bf16.msra.mxu0 0
        %976 = vmatprep.subr.bf16.mxu0 0
        %977 = vmatpush1.bf16.msra.mxu0 0
        %978 = vmatprep.subr.bf16.mxu0 0
        %979 = vmatpush1.bf16.msra.mxu0 0
        %980 = vmatprep.subr.bf16.mxu0 0
        %981 = vmatpush1.bf16.msra.mxu0 0
        %982 = vmatprep.subr.bf16.mxu0 0
        %983 = vmatpush1.bf16.msra.mxu0 0
        %984 = vmatprep.subr.bf16.mxu0 0
        %985 = vmatpush1.bf16.msra.mxu0 0
        %986 = vmatprep.mubr.bf16.mxu0 0
        %987 = vmatmul.mubr.bf16.gmra.mrb[0].mxu0 %v946
        %v988 = vpop.f32.mrb[0].mxu0
        %v989 = vadd.f32 %v921, %v988
        %v990 = vpop.f32.mrb[0].mxu0
        %v991 = vpop.f32.mrb[0].mxu0
        %v992 = vadd.f32 %v924, %v991
        %v993 = vpop.f32.mrb[0].mxu0
        %994 = vmatprep.mubr.bf16.mxu0 0
        %995 = vmatmul.mubr.bf16.gmra.mrb[0].mxu0 %v949
        %v996 = vpop.f32.mrb[0].mxu0
        %v997 = vadd.f32 %v929, %v996
        %v998 = vpop.f32.mrb[0].mxu0
        %v999 = vpop.f32.mrb[0].mxu0
        %v1000 = vadd.f32 %v932, %v999
        %v1001 = vpop.f32.mrb[0].mxu0
        %1002 = vdwg.mxu0
        %v1003 = vld [vmem:[%s6] sm:$0xff]
        %v1004 = vld [vmem:[%s6 + $0x8] sm:$0xff]
        %v1005 = vld [vmem:[%s6 + $0x10] sm:$0xff]
        %v1006 = vld [vmem:[%s6 + $0x18] sm:$0xff]
        %1008 = vset.pattern.permute.xlu0 0
        %1009 = vperm.xlu0 %1008, %v1003
        %v1010 = vpop.permute.xlu0 %1009
        %1013 = vset.pattern.permute.xlu0 0
        %1014 = vperm.xlu0 %1013, %v1004
        %v1015 = vpop.permute.xlu0 %1014
        %1018 = vset.pattern.permute.xlu0 0
        %1019 = vperm.xlu0 %1018, %v1005
        %v1020 = vpop.permute.xlu0 %1019
        %1023 = vset.pattern.permute.xlu0 0
        %1024 = vperm.xlu0 %1023, %v1006
        %v1025 = vpop.permute.xlu0 %1024
        %v1027 = vadd.f32 %v989, %v1010
        %v1028 = vadd.f32 %v992, %v1015
        %v1029 = vadd.f32 %v997, %v1020
        %v1030 = vadd.f32 %v1000, %v1025
        %v1031 = vmax.f32 %v1027, 0.0
        %v1032 = vmax.f32 %v1028, 0.0
        %v1033 = vmax.f32 %v1029, 0.0
        %v1034 = vmax.f32 %v1030, 0.0
        %1035 = vst [vmem:[%s284] sm:$0xff] %v1031
        %1036 = vst [vmem:[%s284 + $0x8] sm:$0xff] %v1032
        %1037 = vst [vmem:[%s284 + $0x10] sm:$0xff] %v1033
        %1038 = vst [vmem:[%s284 + $0x18] sm:$0xff] %v1034
        %s1039 = sand.u32 %s186, 1
        %s1040 = scalar_lea.sflag [#allocation3], %s1039
        %s1041 = sand.u32 %s186, 1
        %s1042 = smul.addr %s1041, 32
        %s1043 = scalar_lea.vmem [#allocation2], %s1042
        // Predicated region
        $region49: #{tpu_custom_call.1} parent=47 // pred_check
          %p1044 = pneg %p196
        $region50: #{tpu_custom_call.1} parent=47 // pred_check_branch
          %1046 = sbr.rel (%p1044) target = $region52
        $region51: #{tpu_custom_call.1} parent=47 // pred_region
          %s1048 = ssub.s32 512, 512
          %1049 = vsyncadd %s1040, %s1048
          %s1050 = smul.addr %s21, 4
          %s1051 = smul.addr %s1050, 128
          %s1052 = scalar_lea.hbm %s7, %s1051
          %s1053 = sshll.u32 %s1043, 4
          %s1054 = int_to_ptr.vmem [resolvable:$true] %s1053
          %1059 = dma.vmem_to_hbm [thread:$0]  %s1054, 512, %s1052, %s1040, 128, 128, 8
        $region52: #{tpu_custom_call.1} parent=47 // pred_fallthru
          _
      $region48: #{tpu_custom_call.1} parent=5 // pred_fallthru
        _
      %p1060 = scmp.le.s32.totalorder 2, %s16
      // Predicated region
      $region53: #{tpu_custom_call.1} parent=5 // pred_check
        %p1061 = pneg %p1060
      $region54: #{tpu_custom_call.1} parent=5 // pred_check_branch
        %1063 = sbr.rel (%p1061) target = $region56
      $region55: #{tpu_custom_call.1} parent=5 // pred_region
        %s1064 = ssub.s32 %s16, 2
        // Predicated region
        $region57: #{tpu_custom_call.1} parent=55 // pred_check
          %p1065 = pneg %p202
        $region58: #{tpu_custom_call.1} parent=55 // pred_check_branch
          %1067 = sbr.rel (%p1065) target = $region60
        $region59: #{tpu_custom_call.1} parent=55 // pred_region
          %s1068 = sand.u32 %s187, 1
          %s1069 = scalar_lea.sflag [#allocation3], %s1068
          %s1070 = sand.u32 %s187, 1
          %s1071 = smul.addr %s1070, 32
          %s1072 = scalar_lea.vmem [#allocation2], %s1071
          %1073 = dma.done %s1069, 512
        $region60: #{tpu_custom_call.1} parent=55 // pred_fallthru
          _
      $region56: #{tpu_custom_call.1} parent=5 // pred_fallthru
        _
    $region6: #{tpu_custom_call.1} parent=1 // loop_footer
      %s20 = sadd.s32 1, %s16
    $region7: #{tpu_custom_call.1} parent=1 // loop_footer_branch
      %15 = sbr.rel target = $region3
    $region8: #{tpu_custom_call.1} parent=1 // loop_exit
      _
    %1074 = vsyncpa [#allocation3], 1
    %s1075 = scalar_lea.sflag [#allocation3], 1
    %1076 = vsyncpa %s1075, 1

</llo_original>
